<compile_context>
chip_gen: v6e
topology: v6e:2x2x1
jax: 0.10.0
libtpu: 0.0.40
codegen_flags: <defaults>
</compile_context>

<pallas_src>
import jax
import jax.numpy as jnp
from jax.experimental import pallas as pl
from jax.experimental.pallas import tpu as pltpu

EPS = 1e-5  # torch.nn.BatchNorm1d default eps
_MIB = 1024 * 1024


# ----------------------------------------------------------------------------
# small helpers
# ----------------------------------------------------------------------------
def _round_up(x, m):
    return ((x + m - 1) // m) * m


def _vmem_capacity_bytes():
    """Physical VMEM per TensorCore; conservative 64 MiB fallback (v7x)."""
    try:
        info = pltpu.get_tpu_info()
        cap = getattr(info, "vmem_capacity_bytes", None)
        if cap:
            return int(cap)
    except Exception:
        pass
    return 64 * _MIB


def _feature_align(input_dim, hidden_dim):
    """MXU-native alignment: 256 on v6e/v7x (2x256x256), 128 on v5e / tiny dims."""
    try:
        kind = jax.devices()[0].device_kind.lower()
    except Exception:
        kind = ""
    is_v5e = ("v5 lite" in kind) or ("v5e" in kind) or ("v5litepod" in kind)
    if (not is_v5e) and max(input_dim, hidden_dim) >= 256:
        return 256
    return 128


def _resident_spec(shape, index_map):
    """Single-buffered BlockSpec for operands with a constant index_map."""
    try:
        return pl.BlockSpec(shape, index_map, pipeline_mode=pl.Buffered(1))
    except Exception:  # older jax without pipeline_mode / Buffered
        return pl.BlockSpec(shape, index_map)


def _pick_row_tile(n_rows, block_rows):
    """Row tile: multiple of 8, <= block_rows, avoiding pathological padding."""
    n8 = _round_up(n_rows, 8)
    if n8 <= block_rows:
        return n8
    tm = block_rows
    while tm > 8:
        waste = _round_up(n_rows, tm) - n_rows
        if waste * 8 <= n_rows:  # <= 12.5% padded rows
            return tm
        tm //= 2
    return 8


def _resident_vmem_est(tm, dp, hp, w_bytes, use_bf16):
    cast = (tm * dp + tm * hp) * 2 if use_bf16 else 0
    return (2 * tm * dp * 4          # x tile, double-buffered
            + 2 * tm * dp * 4        # out tile, double-buffered
            + tm * hp * 4            # h activation (f32)
            + cast                   # bf16 casts of x and h
            + (dp * hp + hp * dp) * w_bytes   # resident weights (single-buffered)
            + (hp + dp) * 4)         # bias rows


def _stream_vmem_est(tm, dp, th, w_bytes, use_bf16):
    cast = (tm * dp + tm * th) * 2 if use_bf16 else 0
    return (2 * tm * dp * 4          # x tile
            + 2 * tm * dp * 4        # out tile
            + tm * dp * 4            # f32 accumulator scratch
            + tm * th * 4            # h block (f32)
            + cast
            + 2 * (dp * th + th * dp) * w_bytes   # streamed w1/w2 blocks (2-buf)
            + 2 * 2 * th * 4 + dp * 4)            # b1 blocks + b2


# ----------------------------------------------------------------------------
# kernels
# ----------------------------------------------------------------------------
def _resident_kernel(x_ref, w1_ref, b1_ref, w2_ref, b2_ref, o_ref):
    """relu( fc2'(relu(fc1'(x))) + x ); BN/bias pre-folded into w', b'."""
    mm_dtype = w1_ref.dtype                               # bf16 or f32 matmul inputs

    # fc1 (+ folded bn1) -> relu.  MXU accumulates in f32.
    h = jnp.dot(x_ref[...].astype(mm_dtype), w1_ref[...],
                preferred_element_type=jnp.float32)       # (TM, Hp)
    h = jnp.maximum(h + b1_ref[...], 0.0)

    # dropout(p=0.2) is the identity at inference.
    # TODO(synk): training-mode dropout (pltpu.prng_* masking) not emitted here.

    # fc2 (+ folded bn2) + residual -> relu.  x_ref is re-read here instead of
    # keeping a live (TM, Dp) f32 value across both matmuls (avoids a VMEM copy).
    y = jnp.dot(h.astype(mm_dtype), w2_ref[...],
                preferred_element_type=jnp.float32)       # (TM, Dp)
    o_ref[...] = jnp.maximum(y + b2_ref[...] + x_ref[...], 0.0)


def _stream_kernel(x_ref, w1_ref, b1_ref, w2_ref, b2_ref, o_ref, acc_ref):
    """Hidden-dim-streaming variant: accumulate over Hp tiles (exact, since
    folded-bn1 + relu are elementwise per hidden column)."""
    j = pl.program_id(1)
    mm_dtype = w1_ref.dtype

    @pl.when(j == 0)
    def _():
        acc_ref[...] = jnp.zeros_like(acc_ref)

    h = jnp.dot(x_ref[...].astype(mm_dtype), w1_ref[...],
                preferred_element_type=jnp.float32)       # (TM, TH)
    h = jnp.maximum(h + b1_ref[...], 0.0)
    acc_ref[...] += jnp.dot(h.astype(mm_dtype), w2_ref[...],
                            preferred_element_type=jnp.float32)

    @pl.when(j == pl.num_programs(1) - 1)
    def _():
        o_ref[...] = jnp.maximum(acc_ref[...] + b2_ref[...] + x_ref[...], 0.0)


# ----------------------------------------------------------------------------
# host-side parameter folding (hoist this off the hot path: call once)
# ----------------------------------------------------------------------------
def _fold_bn_into_linear(w, b, gamma, beta, mean, var):
    """Fold inference BatchNorm1d + bias into an (in, out) weight and a bias."""
    scale = gamma / jnp.sqrt(var.astype(jnp.float32) + EPS)        # (out,)
    w_t = w.T.astype(jnp.float32) * scale[None, :]                 # (in, out)
    b_f = (b.astype(jnp.float32) - mean) * scale + beta
    return w_t, b_f


def prepare_params(params, *, use_bf16=True):
    """Fold BN, pad to MXU-aligned shapes, cast matmul operands. Call once."""
    H, D = params["w1"].shape          # torch Linear weight: (out, in)
    align = _feature_align(D, H)
    Dp = _round_up(D, align)
    Hp = _round_up(H, align)

    w1, b1 = _fold_bn_into_linear(params["w1"], params["b1"], params["bn1_gamma"],
                                  params["bn1_beta"], params["bn1_mean"],
                                  params["bn1_var"])
    w2, b2 = _fold_bn_into_linear(params["w2"], params["b2"], params["bn2_gamma"],
                                  params["bn2_beta"], params["bn2_mean"],
                                  params["bn2_var"])

    mm_dtype = jnp.bfloat16 if use_bf16 else jnp.float32
    w1_p = jnp.zeros((Dp, Hp), jnp.float32).at[:D, :H].set(w1).astype(mm_dtype)
    w2_p = jnp.zeros((Hp, Dp), jnp.float32).at[:H, :D].set(w2).astype(mm_dtype)
    b1_p = jnp.zeros((1, Hp), jnp.float32).at[0, :H].set(b1)
    b2_p = jnp.zeros((1, Dp), jnp.float32).at[0, :D].set(b2)

    return {"w1": w1_p, "b1": b1_p, "w2": w2_p, "b2": b2_p,
            "D": D, "H": H, "Dp": Dp, "Hp": Hp, "align": align,
            "use_bf16": use_bf16}


# ----------------------------------------------------------------------------
# forward
# ----------------------------------------------------------------------------
def residual_block_prepared(x, prep, *, block_rows=None, force_stream_hidden=False):
    N, D = x.shape
    assert D == prep["D"], "input feature dim mismatch"
    Dp, Hp = prep["Dp"], prep["Hp"]
    align = prep["align"]
    use_bf16 = prep["use_bf16"]
    w_bytes = 2 if use_bf16 else 4

    vmem_cap = _vmem_capacity_bytes()
    budget = vmem_cap - 8 * _MIB

    # Generation-aware default row tile (v7x has half the VMEM of v5e/v6e).
    if block_rows is None:
        block_rows = 256 if (vmem_cap <= 64 * _MIB and max(Dp, Hp) >= 2048) else 512

    TM = _pick_row_tile(N, block_rows)
    Np = _round_up(N, TM)
    ntiles = Np // TM
    # Give a multi-TC part (v7x) at least 2 batch tiles to shard when cheap.
    if ntiles == 1 and TM >= 256:
        TM = _round_up((TM + 1) // 2, 8)
        Np = _round_up(N, TM)
        ntiles = Np // TM

    est_resident = _resident_vmem_est(TM, Dp, Hp, w_bytes, use_bf16)
    use_stream = force_stream_hidden or (est_resident > budget)

    if use_stream:
        # Largest hidden tile (multiple of `align`, dividing Hp) that fits.
        TH = align
        for mult in (8, 4, 2, 1):
            cand = mult * align
            if cand <= Hp and Hp % cand == 0 and \
                    _stream_vmem_est(TM, Dp, cand, w_bytes, use_bf16) <= budget:
                TH = cand
                break
        est = _stream_vmem_est(TM, Dp, TH, w_bytes, use_bf16)
        while est > budget and TM > 64:
            TM = _round_up(max(64, TM // 2), 8)
            Np = _round_up(N, TM)
            ntiles = Np // TM
            est = _stream_vmem_est(TM, Dp, TH, w_bytes, use_bf16)
    else:
        TH = Hp
        est = est_resident

    # Always set the scoped VMEM limit explicitly (v5e default is only 16 MiB),
    # clamped to the chip's physical capacity (v7x: 64 MiB per TC).
    vmem_limit = int(min(max(est * 5 // 4, 32 * _MIB), vmem_cap - 4 * _MIB))

    x_p = jnp.zeros((Np, Dp), jnp.float32).at[:N, :D].set(x.astype(jnp.float32))

    flops = 4 * Np * Dp * Hp                       # two matmuls, 2 flops per MAC
    weight_bytes = 2 * Dp * Hp * w_bytes
    if use_stream:
        weight_bytes *= ntiles                     # weights re-streamed per row tile
    bytes_accessed = Np * Dp * 4 * 2 + weight_bytes + (Hp + Dp) * 4
    cost = pl.CostEstimate(flops=int(flops), transcendentals=0,
                           bytes_accessed=int(bytes_accessed))

    if not use_stream:
        kernel = _resident_kernel
        grid = (ntiles,)
        in_specs = [
            pl.BlockSpec((TM, Dp), lambda i: (i, 0)),       # x: tiled over batch
            _resident_spec((Dp, Hp), lambda i: (0, 0)),     # w1': resident, 1-buf
            _resident_spec((1, Hp), lambda i: (0, 0)),      # b1': resident, 1-buf
            _resident_spec((Hp, Dp), lambda i: (0, 0)),     # w2': resident, 1-buf
            _resident_spec((1, Dp), lambda i: (0, 0)),      # b2': resident, 1-buf
        ]
        out_specs = pl.BlockSpec((TM, Dp), lambda i: (i, 0))
        scratch_shapes = []
        dims = ("parallel",)
    else:
        kernel = _stream_kernel
        grid = (ntiles, Hp // TH)
        in_specs = [
            pl.BlockSpec((TM, Dp), lambda i, j: (i, 0)),    # x: constant over j
            pl.BlockSpec((Dp, TH), lambda i, j: (0, j)),    # w1' hidden slab
            pl.BlockSpec((1, TH), lambda i, j: (0, j)),     # b1' hidden slab
            pl.BlockSpec((TH, Dp), lambda i, j: (j, 0)),    # w2' hidden slab
            _resident_spec((1, Dp), lambda i, j: (0, 0)),   # b2': resident, 1-buf
        ]
        out_specs = pl.BlockSpec((TM, Dp), lambda i, j: (i, 0))
        scratch_shapes = [pltpu.VMEM((TM, Dp), jnp.float32)]
        dims = ("parallel", "arbitrary")

    out_p = pl.pallas_call(
        kernel,
        out_shape=jax.ShapeDtypeStruct((Np, Dp), jnp.float32),
        grid=grid,
        in_specs=in_specs,
        out_specs=out_specs,
        scratch_shapes=scratch_shapes,
        compiler_params=pltpu.CompilerParams(
            dimension_semantics=dims,
            vmem_limit_bytes=vmem_limit,
        ),
        cost_estimate=cost,
    )(x_p, prep["w1"], prep["b1"], prep["w2"], prep["b2"])

    return out_p[:N, :D]


def residual_block(x, params, *, use_bf16=True, block_rows=None,
                   force_stream_hidden=False):
    """Convenience wrapper. For repeated forwards, call prepare_params() once
    and reuse the result with residual_block_prepared()."""
    prep = prepare_params(params, use_bf16=use_bf16)
    return residual_block_prepared(x, prep, block_rows=block_rows,
                                   force_stream_hidden=force_stream_hidden)


# ----------------------------------------------------------------------------
# pure-JAX reference + test harness
# ----------------------------------------------------------------------------
def reference_forward(x, params):
    h = x @ params["w1"].T + params["b1"]
    h = params["bn1_gamma"] * (h - params["bn1_mean"]) / jnp.sqrt(
        params["bn1_var"] + EPS) + params["bn1_beta"]
    h = jnp.maximum(h, 0.0)
    y = h @ params["w2"].T + params["b2"]
    y = params["bn2_gamma"] * (y - params["bn2_mean"]) / jnp.sqrt(
        params["bn2_var"] + EPS) + params["bn2_beta"]
    return jnp.maximum(y + x, 0.0)


def init_params(key, input_dim, hidden_dim):
    ks = jax.random.split(key, 4)
    bound1 = 1.0 / jnp.sqrt(input_dim)
    bound2 = 1.0 / jnp.sqrt(hidden_dim)
    ar_h = jnp.arange(hidden_dim, dtype=jnp.float32)
    ar_d = jnp.arange(input_dim, dtype=jnp.float32)
    return {
        # torch Linear stores weight as (out_features, in_features)
        "w1": jax.random.uniform(ks[0], (hidden_dim, input_dim),
                                 jnp.float32, -bound1, bound1),
        "b1": jax.random.uniform(ks[1], (hidden_dim,),
                                 jnp.float32, -bound1, bound1),
        "w2": jax.random.uniform(ks[2], (input_dim, hidden_dim),
                                 jnp.float32, -bound2, bound2),
        "b2": jax.random.uniform(ks[3], (input_dim,),
                                 jnp.float32, -bound2, bound2),
        # non-trivial (but deterministic) BatchNorm running state, so the fold
        # is actually exercised.
        "bn1_gamma": 1.0 + 0.1 * jnp.cos(ar_h),
        "bn1_beta": 0.1 * jnp.sin(ar_h),
        "bn1_mean": 0.05 * jnp.sin(ar_h),
        "bn1_var": 1.0 + 0.02 * ar_h / max(hidden_dim, 1),
        "bn2_gamma": 1.0 - 0.1 * jnp.sin(ar_d),
        "bn2_beta": 0.05 * jnp.cos(ar_d),
        "bn2_mean": 0.03 * jnp.cos(ar_d),
        "bn2_var": 1.0 + 0.01 * ar_d / max(input_dim, 1),
    }


if __name__ == "__main__":
    key = jax.random.PRNGKey(0)
    k_x1, k_p1, k_x2, k_p2 = jax.random.split(key, 4)

    # --- small shapes, resident-weight path ---------------------------------
    batch, input_dim, hidden_dim = 8, 16, 32
    x = jax.random.normal(k_x1, (batch, input_dim), jnp.float32)
    params = init_params(k_p1, input_dim, hidden_dim)
    ref = reference_forward(x, params)

    prep_f32 = prepare_params(params, use_bf16=False)   # fold/pad hoisted once
    out_f32 = jax.block_until_ready(residual_block_prepared(x, prep_f32))
    assert out_f32.shape == (batch, input_dim)
    assert jnp.allclose(out_f32, ref, atol=1e-4, rtol=1e-4), "f32 mismatch vs reference"

    prep_bf16 = prepare_params(params, use_bf16=True)
    out_bf16 = jax.block_until_ready(residual_block_prepared(x, prep_bf16))
    assert out_bf16.shape == (batch, input_dim)
    assert jnp.allclose(out_bf16, ref, atol=5e-2, rtol=5e-2), "bf16 mismatch vs reference"

    # --- hidden-dim streaming fallback path (forced), odd batch -------------
    batch2, input_dim2, hidden_dim2 = 10, 16, 300
    x2 = jax.random.normal(k_x2, (batch2, input_dim2), jnp.float32)
    params2 = init_params(k_p2, input_dim2, hidden_dim2)
    ref2 = reference_forward(x2, params2)

    out_stream = jax.block_until_ready(
        residual_block(x2, params2, use_bf16=False, force_stream_hidden=True))
    assert out_stream.shape == (batch2, input_dim2)
    assert jnp.allclose(out_stream, ref2, atol=1e-4, rtol=1e-4), \
        "streaming-path mismatch vs reference"

    print("KERNEL_OK")
</pallas_src>

<mosaic_0001>
module attributes {stable_mosaic.version = 11 : i64} {
  func.func @_resident_kernel(%arg0: i32, %arg1: memref<8x128xf32, #tpu.memory_space<vmem>>, %arg2: memref<128x128xf32, #tpu.memory_space<vmem>>, %arg3: memref<1x128xf32, #tpu.memory_space<vmem>>, %arg4: memref<128x128xf32, #tpu.memory_space<vmem>>, %arg5: memref<1x128xf32, #tpu.memory_space<vmem>>, %arg6: memref<8x128xf32, #tpu.memory_space<vmem>>) attributes {dimension_semantics = [#tpu.dimension_semantics<parallel>], iteration_bounds = array<i64: 1>, scalar_prefetch = 0 : i64, scratch_operands = 0 : i64, tpu.core_type = #tpu.core_type<tc>, window_params = [{transform_indices = @transform_0, window_bounds = array<i64: 8, 128>}, {pipeline_mode = #tpu.pipeline_mode<synchronous>, transform_indices = @transform_1, window_bounds = array<i64: 128, 128>}, {pipeline_mode = #tpu.pipeline_mode<synchronous>, transform_indices = @transform_2, window_bounds = array<i64: 1, 128>}, {pipeline_mode = #tpu.pipeline_mode<synchronous>, transform_indices = @transform_3, window_bounds = array<i64: 128, 128>}, {pipeline_mode = #tpu.pipeline_mode<synchronous>, transform_indices = @transform_4, window_bounds = array<i64: 1, 128>}, {transform_indices = @transform_5, window_bounds = array<i64: 8, 128>}]} {
    %c0 = arith.constant 0 : index
    %c0_0 = arith.constant 0 : index
    %0 = vector.load %arg1[%c0, %c0_0] : memref<8x128xf32, #tpu.memory_space<vmem>>, vector<8x128xf32>
    %c0_1 = arith.constant 0 : index
    %c0_2 = arith.constant 0 : index
    %1 = vector.load %arg2[%c0_1, %c0_2] : memref<128x128xf32, #tpu.memory_space<vmem>>, vector<128x128xf32>
    %cst = arith.constant dense<0.000000e+00> : vector<8x128xf32>
    %2 = tpu.matmul %0, %1, %cst {dimension_numbers = #tpu.dot_dimension_numbers<[1], [0], [0], [1], [0, 0, 1, 1], [], []>} : vector<8x128xf32>, vector<128x128xf32>, vector<8x128xf32> -> vector<8x128xf32>
    %c0_3 = arith.constant 0 : index
    %c0_4 = arith.constant 0 : index
    %3 = vector.load %arg3[%c0_3, %c0_4] : memref<1x128xf32, #tpu.memory_space<vmem>>, vector<1x128xf32>
    %4 = vector.broadcast %3 : vector<1x128xf32> to vector<8x128xf32>
    %5 = arith.addf %2, %4 : vector<8x128xf32>
    %cst_5 = arith.constant 0.000000e+00 : f32
    %6 = vector.broadcast %cst_5 : f32 to vector<8x128xf32>
    %7 = arith.maximumf %5, %6 : vector<8x128xf32>
    %c0_6 = arith.constant 0 : index
    %c0_7 = arith.constant 0 : index
    %8 = vector.load %arg4[%c0_6, %c0_7] : memref<128x128xf32, #tpu.memory_space<vmem>>, vector<128x128xf32>
    %cst_8 = arith.constant dense<0.000000e+00> : vector<8x128xf32>
    %9 = tpu.matmul %7, %8, %cst_8 {dimension_numbers = #tpu.dot_dimension_numbers<[1], [0], [0], [1], [0, 0, 1, 1], [], []>} : vector<8x128xf32>, vector<128x128xf32>, vector<8x128xf32> -> vector<8x128xf32>
    %c0_9 = arith.constant 0 : index
    %c0_10 = arith.constant 0 : index
    %10 = vector.load %arg5[%c0_9, %c0_10] : memref<1x128xf32, #tpu.memory_space<vmem>>, vector<1x128xf32>
    %11 = vector.broadcast %10 : vector<1x128xf32> to vector<8x128xf32>
    %12 = arith.addf %9, %11 : vector<8x128xf32>
    %c0_11 = arith.constant 0 : index
    %c0_12 = arith.constant 0 : index
    %13 = vector.load %arg1[%c0_11, %c0_12] : memref<8x128xf32, #tpu.memory_space<vmem>>, vector<8x128xf32>
    %14 = arith.addf %12, %13 : vector<8x128xf32>
    %cst_13 = arith.constant 0.000000e+00 : f32
    %15 = vector.broadcast %cst_13 : f32 to vector<8x128xf32>
    %16 = arith.maximumf %14, %15 : vector<8x128xf32>
    %c0_14 = arith.constant 0 : index
    %c0_15 = arith.constant 0 : index
    %17 = vector.load %arg6[%c0_14, %c0_15] : memref<8x128xf32, #tpu.memory_space<vmem>>, vector<8x128xf32>
    tpu.vector_store %arg6[%c0_14, %c0_15], %16 {strides = array<i32>} : memref<8x128xf32, #tpu.memory_space<vmem>>, vector<8x128xf32>,
    return
  }
  func.func @transform_0(%arg0: i32) -> (i32, i32) {
    %c0_i32 = arith.constant 0 : i32
    %c0_i32_0 = arith.constant 0 : i32
    return %arg0, %c0_i32 : i32, i32
  }
  func.func @transform_1(%arg0: i32) -> (i32, i32) {
    %c0_i32 = arith.constant 0 : i32
    %c0_i32_0 = arith.constant 0 : i32
    %c0_i32_1 = arith.constant 0 : i32
    return %c0_i32, %c0_i32_0 : i32, i32
  }
  func.func @transform_2(%arg0: i32) -> (i32, i32) {
    %c0_i32 = arith.constant 0 : i32
    %c0_i32_0 = arith.constant 0 : i32
    %c0_i32_1 = arith.constant 0 : i32
    return %c0_i32, %c0_i32_0 : i32, i32
  }
  func.func @transform_3(%arg0: i32) -> (i32, i32) {
    %c0_i32 = arith.constant 0 : i32
    %c0_i32_0 = arith.constant 0 : i32
    %c0_i32_1 = arith.constant 0 : i32
    return %c0_i32, %c0_i32_0 : i32, i32
  }
  func.func @transform_4(%arg0: i32) -> (i32, i32) {
    %c0_i32 = arith.constant 0 : i32
    %c0_i32_0 = arith.constant 0 : i32
    %c0_i32_1 = arith.constant 0 : i32
    return %c0_i32, %c0_i32_0 : i32, i32
  }
  func.func @transform_5(%arg0: i32) -> (i32, i32) {
    %c0_i32 = arith.constant 0 : i32
    %c0_i32_0 = arith.constant 0 : i32
    return %arg0, %c0_i32 : i32, i32
  }
}

</mosaic_0001>

<llo_original>
// kernel: tpu_custom_call.1
$region0: #{tpu_custom_call.1}
  #allocation0 [shape = 'u32[]', space=smem, size = 0x4, offset = 0x4, fixed_abs, tag = 'smem constant byte address 0x4 - core index']
  #allocation1 [shape = 'u32[144,128]{1,0:T(1,128)}', space=vmem, size = 0x12000, scoped, tag = 'internal scratch']
  %s0 = inlined_call_operand.hbm [shape: f32[8,128], index: 0, kind: input, shape index: {}]
  %s1 = inlined_call_operand.hbm [shape: f32[128,128], index: 1, kind: input, shape index: {}]
  %s2 = inlined_call_operand.vmem [shape: f32[1,128], index: 2, kind: input, shape index: {}]
  %s3 = inlined_call_operand.hbm [shape: f32[128,128], index: 3, kind: input, shape index: {}]
  %s4 = inlined_call_operand.vmem [shape: f32[1,128], index: 4, kind: input, shape index: {}]
  %s5 = inlined_call_operand.hbm [shape: f32[8,128], index: 5, kind: output, shape index: {}]
  %s6 = sld [smem:[#allocation0]]
  $region42: #{tpu_custom_call.1} parent=0
    _
  %s8 = ssub.s32 1, %s6
  %s9 = scalar_select 0, %s8, %s6
  $region1: #{tpu_custom_call.1} parent=0
    #allocation2 [shape = 'u8[4096]{0}', space=vmem, size = 0x1000, scoped, tag = 'input window, operand 0, single buffered']
    #allocation3 [shape = 's32[1]{0}', space=sflag, size = 0x4, scoped, tag = 'scoped memory for tpu_custom_call.1']
    #allocation4 [shape = 's32[1]{0}', space=sflag, size = 0x4, scoped, tag = 'scoped memory for tpu_custom_call.1']
    #allocation5 [shape = 'u8[65536]{0}', space=vmem, size = 0x10000, scoped, tag = 'input window, operand 1, single buffered']
    #allocation6 [shape = 's32[1]{0}', space=sflag, size = 0x4, scoped, tag = 'scoped memory for tpu_custom_call.1']
    #allocation7 [shape = 'u8[65536]{0}', space=vmem, size = 0x10000, scoped, tag = 'input window, operand 3, single buffered']
    #allocation8 [shape = 'u8[4096]{0}', space=vmem, size = 0x1000, scoped, tag = 'output window, operand 0, single buffered']
    %10 = vsyncpa [#allocation3], 0
    %11 = vsyncpa [#allocation6], 0
    %12 = vsyncpa [#allocation4], 0
    // Predicated region
    $region2: #{tpu_custom_call.1} parent=1 // pred_check
      _
    $region3: #{tpu_custom_call.1} parent=1 // pred_check_branch
      %14 = sbr.rel (0) target = $region5
    $region4: #{tpu_custom_call.1} parent=1 // pred_region
      %s16 = ssub.s32 128, 128
      %17 = vsyncadd [#allocation3], %s16
      %s19 = sshll.u32 [#allocation2], 4
      %s20 = int_to_ptr.vmem [resolvable:$true] %s19
      %22 = dma.hbm_to_vmem [thread:$0]  %s0, 128, %s20, [#allocation3]
    $region5: #{tpu_custom_call.1} parent=1 // pred_fallthru
      _
    // Predicated region
    $region6: #{tpu_custom_call.1} parent=1 // pred_check
      _
    $region7: #{tpu_custom_call.1} parent=1 // pred_check_branch
      %24 = sbr.rel (0) target = $region9
    $region8: #{tpu_custom_call.1} parent=1 // pred_region
      %s26 = ssub.s32 2048, 2048
      %27 = vsyncadd [#allocation6], %s26
      %s28 = sshll.u32 [#allocation5], 4
      %s29 = int_to_ptr.vmem [resolvable:$true] %s28
      %34 = dma.hbm_to_vmem [thread:$0]  %s1, 2048, %s29, [#allocation6], 128, 128, 8
    $region9: #{tpu_custom_call.1} parent=1 // pred_fallthru
      _
    // Predicated region
    $region10: #{tpu_custom_call.1} parent=1 // pred_check
      _
    $region11: #{tpu_custom_call.1} parent=1 // pred_check_branch
      %36 = sbr.rel (0) target = $region13
    $region12: #{tpu_custom_call.1} parent=1 // pred_region
      _
    $region13: #{tpu_custom_call.1} parent=1 // pred_fallthru
      _
    // Predicated region
    $region14: #{tpu_custom_call.1} parent=1 // pred_check
      _
    $region15: #{tpu_custom_call.1} parent=1 // pred_check_branch
      %38 = sbr.rel (0) target = $region17
    $region16: #{tpu_custom_call.1} parent=1 // pred_region
      %s40 = ssub.s32 2048, 2048
      %41 = vsyncadd [#allocation6], %s40
      %s42 = sshll.u32 [#allocation7], 4
      %s43 = int_to_ptr.vmem [resolvable:$true] %s42
      %48 = dma.hbm_to_vmem [thread:$0]  %s3, 2048, %s43, [#allocation6], 128, 128, 8
    $region17: #{tpu_custom_call.1} parent=1 // pred_fallthru
      _
    // Predicated region
    $region18: #{tpu_custom_call.1} parent=1 // pred_check
      _
    $region19: #{tpu_custom_call.1} parent=1 // pred_check_branch
      %50 = sbr.rel (0) target = $region21
    $region20: #{tpu_custom_call.1} parent=1 // pred_region
      _
    $region21: #{tpu_custom_call.1} parent=1 // pred_fallthru
      _
    // Predicated region
    $region22: #{tpu_custom_call.1} parent=1 // pred_check
      _
    $region23: #{tpu_custom_call.1} parent=1 // pred_check_branch
      %52 = sbr.rel (0) target = $region25
    $region24: #{tpu_custom_call.1} parent=1 // pred_region
      %53 = dma.done [#allocation3], 128
    $region25: #{tpu_custom_call.1} parent=1 // pred_fallthru
      _
    // Predicated region
    $region26: #{tpu_custom_call.1} parent=1 // pred_check
      _
    $region27: #{tpu_custom_call.1} parent=1 // pred_check_branch
      %55 = sbr.rel (0) target = $region29
    $region28: #{tpu_custom_call.1} parent=1 // pred_region
      %56 = dma.done [#allocation6], 2048
    $region29: #{tpu_custom_call.1} parent=1 // pred_fallthru
      _
    // Predicated region
    $region30: #{tpu_custom_call.1} parent=1 // pred_check
      _
    $region31: #{tpu_custom_call.1} parent=1 // pred_check_branch
      %58 = sbr.rel (0) target = $region33
    $region32: #{tpu_custom_call.1} parent=1 // pred_region
      %59 = dma.done [#allocation6], 2048
    $region33: #{tpu_custom_call.1} parent=1 // pred_fallthru
      _
    %v60 = vld [vmem:[#allocation2] sm:$0xff]
    %v61 = vld [vmem:[#allocation5] sm:$0xff]
    %v62 = vld [vmem:[#allocation5 + $0x8] sm:$0xff]
    %v63 = vld [vmem:[#allocation5 + $0x10] sm:$0xff]
    %v64 = vld [vmem:[#allocation5 + $0x18] sm:$0xff]
    %v65 = vld [vmem:[#allocation5 + $0x20] sm:$0xff]
    %v66 = vld [vmem:[#allocation5 + $0x28] sm:$0xff]
    %v67 = vld [vmem:[#allocation5 + $0x30] sm:$0xff]
    %v68 = vld [vmem:[#allocation5 + $0x38] sm:$0xff]
    %v69 = vld [vmem:[#allocation5 + $0x40] sm:$0xff]
    %v70 = vld [vmem:[#allocation5 + $0x48] sm:$0xff]
    %v71 = vld [vmem:[#allocation5 + $0x50] sm:$0xff]
    %v72 = vld [vmem:[#allocation5 + $0x58] sm:$0xff]
    %v73 = vld [vmem:[#allocation5 + $0x60] sm:$0xff]
    %v74 = vld [vmem:[#allocation5 + $0x68] sm:$0xff]
    %v75 = vld [vmem:[#allocation5 + $0x70] sm:$0xff]
    %v76 = vld [vmem:[#allocation5 + $0x78] sm:$0xff]
    %v77 = vld [vmem:[%s2] sm:$0x1]
    %v79 = vlaneseq
    %v80 = vshrl.u32 %v79, 7
    %v81 = vsub.s32 0, %v80
    %v82 = vrot.slane %v77, %v81
    %84 = vmatprep.subr.mxu0 0.0
    %85 = vmatpush1.msra.mxu0 %v76
    %86 = vmatprep.subr.mxu0 0.0
    %87 = vmatpush1.msra.mxu0 %v75
    %88 = vmatprep.subr.mxu0 0.0
    %89 = vmatpush1.msra.mxu0 %v74
    %90 = vmatprep.subr.mxu0 0.0
    %91 = vmatpush1.msra.mxu0 %v73
    %92 = vmatprep.subr.mxu0 0.0
    %93 = vmatpush1.msra.mxu0 %v72
    %94 = vmatprep.subr.mxu0 0.0
    %95 = vmatpush1.msra.mxu0 %v71
    %96 = vmatprep.subr.mxu0 0.0
    %97 = vmatpush1.msra.mxu0 %v70
    %98 = vmatprep.subr.mxu0 0.0
    %99 = vmatpush1.msra.mxu0 %v69
    %100 = vmatprep.subr.mxu0 0.0
    %101 = vmatpush1.msra.mxu0 %v68
    %102 = vmatprep.subr.mxu0 0.0
    %103 = vmatpush1.msra.mxu0 %v67
    %104 = vmatprep.subr.mxu0 0.0
    %105 = vmatpush1.msra.mxu0 %v66
    %106 = vmatprep.subr.mxu0 0.0
    %107 = vmatpush1.msra.mxu0 %v65
    %108 = vmatprep.subr.mxu0 0.0
    %109 = vmatpush1.msra.mxu0 %v64
    %110 = vmatprep.subr.mxu0 0.0
    %111 = vmatpush1.msra.mxu0 %v63
    %112 = vmatprep.subr.mxu0 0.0
    %113 = vmatpush1.msra.mxu0 %v62
    %114 = vmatprep.subr.mxu0 0.0
    %115 = vmatpush1.msra.mxu0 %v61
    %116 = vmatprep.subr.mxu0 0.0
    %117 = vmatpush2.msra.mxu0 0.0
    %118 = vmatprep.subr.mxu0 0.0
    %119 = vmatpush2.msra.mxu0 0.0
    %120 = vmatprep.subr.mxu0 0.0
    %121 = vmatpush2.msra.mxu0 0.0
    %122 = vmatprep.subr.mxu0 0.0
    %123 = vmatpush2.msra.mxu0 0.0
    %124 = vmatprep.subr.mxu0 0.0
    %125 = vmatpush2.msra.mxu0 0.0
    %126 = vmatprep.subr.mxu0 0.0
    %127 = vmatpush2.msra.mxu0 0.0
    %128 = vmatprep.subr.mxu0 0.0
    %129 = vmatpush2.msra.mxu0 0.0
    %130 = vmatprep.subr.mxu0 0.0
    %131 = vmatpush2.msra.mxu0 0.0
    %132 = vmatprep.subr.mxu0 0.0
    %133 = vmatpush2.msra.mxu0 0.0
    %134 = vmatprep.subr.mxu0 0.0
    %135 = vmatpush2.msra.mxu0 0.0
    %136 = vmatprep.subr.mxu0 0.0
    %137 = vmatpush2.msra.mxu0 0.0
    %138 = vmatprep.subr.mxu0 0.0
    %139 = vmatpush2.msra.mxu0 0.0
    %140 = vmatprep.subr.mxu0 0.0
    %141 = vmatpush2.msra.mxu0 0.0
    %142 = vmatprep.subr.mxu0 0.0
    %143 = vmatpush2.msra.mxu0 0.0
    %144 = vmatprep.subr.mxu0 0.0
    %145 = vmatpush2.msra.mxu0 0.0
    %146 = vmatprep.subr.mxu0 0.0
    %147 = vmatpush2.msra.mxu0 0.0
    %148 = vmatprep.mubr.f32.mxu0 0.0
    %149 = vmatmul.mubr.f32.gmra.mxu0 %v60
    %v150 = vpop.f32.mrf.mxu0
    %v151 = vadd.f32 %v82, %v150
    %v152 = vpop.f32.mrf.mxu0
    %153 = vdwg.mxu0
    %v154 = vmax.f32 %v151, 0.0
    %v155 = vld [vmem:[#allocation7] sm:$0xff]
    %v156 = vld [vmem:[#allocation7 + $0x8] sm:$0xff]
    %v157 = vld [vmem:[#allocation7 + $0x10] sm:$0xff]
    %v158 = vld [vmem:[#allocation7 + $0x18] sm:$0xff]
    %v159 = vld [vmem:[#allocation7 + $0x20] sm:$0xff]
    %v160 = vld [vmem:[#allocation7 + $0x28] sm:$0xff]
    %v161 = vld [vmem:[#allocation7 + $0x30] sm:$0xff]
    %v162 = vld [vmem:[#allocation7 + $0x38] sm:$0xff]
    %v163 = vld [vmem:[#allocation7 + $0x40] sm:$0xff]
    %v164 = vld [vmem:[#allocation7 + $0x48] sm:$0xff]
    %v165 = vld [vmem:[#allocation7 + $0x50] sm:$0xff]
    %v166 = vld [vmem:[#allocation7 + $0x58] sm:$0xff]
    %v167 = vld [vmem:[#allocation7 + $0x60] sm:$0xff]
    %v168 = vld [vmem:[#allocation7 + $0x68] sm:$0xff]
    %v169 = vld [vmem:[#allocation7 + $0x70] sm:$0xff]
    %v170 = vld [vmem:[#allocation7 + $0x78] sm:$0xff]
    %v171 = vld [vmem:[%s4] sm:$0x1]
    %v173 = vlaneseq
    %v174 = vshrl.u32 %v173, 7
    %v175 = vsub.s32 0, %v174
    %v176 = vrot.slane %v171, %v175
    %178 = vmatprep.subr.mxu0 0.0
    %179 = vmatpush1.msra.mxu0 %v170
    %180 = vmatprep.subr.mxu0 0.0
    %181 = vmatpush1.msra.mxu0 %v169
    %182 = vmatprep.subr.mxu0 0.0
    %183 = vmatpush1.msra.mxu0 %v168
    %184 = vmatprep.subr.mxu0 0.0
    %185 = vmatpush1.msra.mxu0 %v167
    %186 = vmatprep.subr.mxu0 0.0
    %187 = vmatpush1.msra.mxu0 %v166
    %188 = vmatprep.subr.mxu0 0.0
    %189 = vmatpush1.msra.mxu0 %v165
    %190 = vmatprep.subr.mxu0 0.0
    %191 = vmatpush1.msra.mxu0 %v164
    %192 = vmatprep.subr.mxu0 0.0
    %193 = vmatpush1.msra.mxu0 %v163
    %194 = vmatprep.subr.mxu0 0.0
    %195 = vmatpush1.msra.mxu0 %v162
    %196 = vmatprep.subr.mxu0 0.0
    %197 = vmatpush1.msra.mxu0 %v161
    %198 = vmatprep.subr.mxu0 0.0
    %199 = vmatpush1.msra.mxu0 %v160
    %200 = vmatprep.subr.mxu0 0.0
    %201 = vmatpush1.msra.mxu0 %v159
    %202 = vmatprep.subr.mxu0 0.0
    %203 = vmatpush1.msra.mxu0 %v158
    %204 = vmatprep.subr.mxu0 0.0
    %205 = vmatpush1.msra.mxu0 %v157
    %206 = vmatprep.subr.mxu0 0.0
    %207 = vmatpush1.msra.mxu0 %v156
    %208 = vmatprep.subr.mxu0 0.0
    %209 = vmatpush1.msra.mxu0 %v155
    %210 = vmatprep.subr.mxu0 0.0
    %211 = vmatpush2.msra.mxu0 0.0
    %212 = vmatprep.subr.mxu0 0.0
    %213 = vmatpush2.msra.mxu0 0.0
    %214 = vmatprep.subr.mxu0 0.0
    %215 = vmatpush2.msra.mxu0 0.0
    %216 = vmatprep.subr.mxu0 0.0
    %217 = vmatpush2.msra.mxu0 0.0
    %218 = vmatprep.subr.mxu0 0.0
    %219 = vmatpush2.msra.mxu0 0.0
    %220 = vmatprep.subr.mxu0 0.0
    %221 = vmatpush2.msra.mxu0 0.0
    %222 = vmatprep.subr.mxu0 0.0
    %223 = vmatpush2.msra.mxu0 0.0
    %224 = vmatprep.subr.mxu0 0.0
    %225 = vmatpush2.msra.mxu0 0.0
    %226 = vmatprep.subr.mxu0 0.0
    %227 = vmatpush2.msra.mxu0 0.0
    %228 = vmatprep.subr.mxu0 0.0
    %229 = vmatpush2.msra.mxu0 0.0
    %230 = vmatprep.subr.mxu0 0.0
    %231 = vmatpush2.msra.mxu0 0.0
    %232 = vmatprep.subr.mxu0 0.0
    %233 = vmatpush2.msra.mxu0 0.0
    %234 = vmatprep.subr.mxu0 0.0
    %235 = vmatpush2.msra.mxu0 0.0
    %236 = vmatprep.subr.mxu0 0.0
    %237 = vmatpush2.msra.mxu0 0.0
    %238 = vmatprep.subr.mxu0 0.0
    %239 = vmatpush2.msra.mxu0 0.0
    %240 = vmatprep.subr.mxu0 0.0
    %241 = vmatpush2.msra.mxu0 0.0
    %242 = vmatprep.mubr.f32.mxu0 0.0
    %243 = vmatmul.mubr.f32.gmra.mxu0 %v154
    %v244 = vpop.f32.mrf.mxu0
    %v245 = vadd.f32 %v176, %v244
    %v246 = vpop.f32.mrf.mxu0
    %247 = vdwg.mxu0
    %v248 = vadd.f32 %v245, %v60
    %v249 = vmax.f32 %v248, 0.0
    %250 = vst [vmem:[#allocation8] sm:$0xff] %v249
    // Predicated region
    $region34: #{tpu_custom_call.1} parent=1 // pred_check
      _
    $region35: #{tpu_custom_call.1} parent=1 // pred_check_branch
      %252 = sbr.rel (0) target = $region37
    $region36: #{tpu_custom_call.1} parent=1 // pred_region
      %s254 = ssub.s32 128, 128
      %255 = vsyncadd [#allocation4], %s254
      %s257 = sshll.u32 [#allocation8], 4
      %s258 = int_to_ptr.vmem [resolvable:$true] %s257
      %260 = dma.vmem_to_hbm [thread:$0]  %s258, 128, %s5, [#allocation4]
    $region37: #{tpu_custom_call.1} parent=1 // pred_fallthru
      _
    // Predicated region
    $region38: #{tpu_custom_call.1} parent=1 // pred_check
      _
    $region39: #{tpu_custom_call.1} parent=1 // pred_check_branch
      %262 = sbr.rel (0) target = $region41
    $region40: #{tpu_custom_call.1} parent=1 // pred_region
      %263 = dma.done [#allocation4], 128
    $region41: #{tpu_custom_call.1} parent=1 // pred_fallthru
      _
    %264 = vsyncpa [#allocation3], 1
    %265 = vsyncpa [#allocation6], 1
    %266 = vsyncpa [#allocation4], 1

</llo_original>
